<compile_context>
chip_gen: v6e
topology: v6e:2x2x1
jax: 0.10.0
libtpu: 0.0.40
codegen_flags: <defaults>
</compile_context>

<pallas_src>
import jax
import jax.numpy as jnp
from jax import lax
from jax.experimental import pallas as pl
from jax.experimental.pallas import tpu as pltpu


def textmlp_kernel(idx_ref, emb_ref, w_ref, b_ref, out_ref):
    """idx_ref: VMEM (TB, S) int32 (padded with -1)
    emb_ref: VMEM (V, E) bf16 | w_ref: VMEM (E, H) bf16 (fc1 weight, transposed)
    b_ref: VMEM (1, H) f32    | out_ref: VMEM (TB, H) f32"""
    idx = idx_ref[...]                                    # (TB, S) int32
    tb, seq = idx.shape
    vocab = emb_ref.shape[0]

    # counts[b, v] = #occurrences of token v in row b.  One vectorized compare
    # against a lane iota + an int32 sublane reduction over S (no dependent
    # per-step f32 chain).  Padding (-1) and any out-of-range id match no lane.
    vocab_iota = lax.broadcasted_iota(jnp.int32, (tb, seq, vocab), 2)
    counts = jnp.sum((idx[:, :, None] == vocab_iota).astype(jnp.int32),
                     axis=1)                              # (TB, V) int32, exact

    # Sequence lengths (non-padding count) and 1/len, guarded for empty rows.
    lengths = jnp.sum((idx >= 0).astype(jnp.int32), axis=1, keepdims=True)  # (TB,1)
    len_f = lengths.astype(jnp.float32)
    inv_len = jnp.where(lengths > 0, 1.0 / jnp.maximum(len_f, 1.0), 0.0)    # (TB,1)

    # torch.mean(embedding(idx), dim=0)  ==  (counts @ emb) * (1/len):
    # bf16 MXU matmul (counts are exact small ints in bf16), f32 accumulation,
    # with the 1/len scale applied to the (TB,E) result, not the (TB,V) operand.
    counts_bf16 = counts.astype(jnp.float32).astype(jnp.bfloat16)
    mean = jnp.dot(counts_bf16, emb_ref[...],
                   preferred_element_type=jnp.float32) * inv_len            # (TB,E) f32

    # F.relu(fc1(x)): bf16 MXU matmul, f32 accumulate; bias + ReLU on the VPU.
    y = jnp.dot(mean.astype(jnp.bfloat16), w_ref[...],
                preferred_element_type=jnp.float32) + b_ref[...]
    y = jnp.maximum(y, jnp.float32(0.0))

    # Empty rows -> exact zeros, matching `torch.zeros(1, out_features)`.
    # (Must stay AFTER the ReLU: ReLU(bias) is generally nonzero.)
    out_ref[...] = y * (lengths > 0).astype(jnp.float32)


def _auto_batch_tile(batch):
    """Fill the MXU M dimension (<=256 rows) but keep >=2 grid steps when the
    batch allows, so the "parallel" batch axis shards over v7x's 2 TensorCores."""
    candidates = [t for t in (256, 128, 64, 32, 16, 8)
                  if t <= batch and batch % t == 0]
    if not candidates:
        return batch
    for t in candidates:
        if batch // t >= 2:
            return t
    return candidates[-1]


def text_mlp_pallas(idx_padded, embedding_bf16, w_fc1_t_bf16, b_fc1, *, batch_tile=None):
    """idx_padded: (B, S) int32 padded with -1, embedding_bf16: (V, E) bf16,
    w_fc1_t_bf16: (E, H) bf16 (torch fc1.weight transposed), b_fc1: (1, H) f32."""
    batch, seq = idx_padded.shape
    vocab, emb_dim = embedding_bf16.shape
    hidden = w_fc1_t_bf16.shape[1]
    if batch_tile is None:
        batch_tile = _auto_batch_tile(batch)
    assert batch % batch_tile == 0, "batch must be a multiple of the batch tile"

    # Advisory cost hint so XLA schedules the surrounding graph sensibly.
    flops = 2 * batch * (vocab * emb_dim + emb_dim * hidden)
    bytes_accessed = (idx_padded.size * 4 + embedding_bf16.size * 2
                      + w_fc1_t_bf16.size * 2 + b_fc1.size * 4 + batch * hidden * 4)

    return pl.pallas_call(
        textmlp_kernel,
        out_shape=jax.ShapeDtypeStruct((batch, hidden), jnp.float32),
        grid=(batch // batch_tile,),
        in_specs=[
            pl.BlockSpec((batch_tile, seq), lambda i: (i, 0)),   # padded token ids
            pl.BlockSpec((vocab, emb_dim), lambda i: (0, 0)),    # embedding table (bf16)
            pl.BlockSpec((emb_dim, hidden), lambda i: (0, 0)),   # fc1 weight (E, H) bf16
            pl.BlockSpec((1, hidden), lambda i: (0, 0)),         # fc1 bias   (1, H) f32
        ],
        out_specs=pl.BlockSpec((batch_tile, hidden), lambda i: (i, 0)),
        compiler_params=pltpu.CompilerParams(
            dimension_semantics=("parallel",)),                  # shard batch over v7x's 2 TCs
        cost_estimate=pl.CostEstimate(flops=flops, transcendentals=0,
                                      bytes_accessed=int(bytes_accessed)),
    )(idx_padded, embedding_bf16, w_fc1_t_bf16, b_fc1)
    # TODO(synk): for real vocab sizes (esp. v7x's 64 MiB VMEM) single-buffer the
    # grid-invariant table/weight blocks (pipeline_mode=pl.Buffered(1)), set
    # vmem_limit_bytes explicitly, and replace the dense (TB,V)@(V,E) counts
    # matmul with a V-tiled "arbitrary" reduction axis or a scalar-prefetch DMA
    # row-gather so only the S used embedding rows are streamed.


def tokenize(label, label_map):
    """Exact replica of the Python/string part of TextMLP.forward."""
    input_text = label_map.get(label, '')
    words = input_text.split()
    vocab = {word: idx for idx, word in enumerate(words)}
    indices = [vocab[word] for word in words if word in vocab]
    return indices


if __name__ == "__main__":
    # Module hyperparameters — lane-dense (multiples of 128); batch 16 gives two
    # parallel grid steps with the auto-picked tile of 8.
    vocab_size, embedding_dim, hidden_dim = 128, 128, 128
    batch, max_seq = 16, 16

    label_map = {
        0: "the quick brown fox jumps over the lazy dog",
        1: "pack my box with five dozen liquor jugs",
        2: "sphinx of black quartz judge my vow",
        3: "how vexingly quick daft zebras jump",
        4: "",                                            # empty text -> zeros row
        5: "jackdaws love my big sphinx of quartz",
        6: "the five boxing wizards jump quickly",
        8: "we promptly judged antique ivory buckles",
        9: "crazy fredrick bought many very exquisite opal jewels",
        10: "a mad boxer shot a quick gloved jab",
        11: "grumpy wizards make toxic brew for the evil queen and jack",
        12: "waltz bad nymph for quick jigs vex",
        14: "bright vixens jump dozy fowl quack",
        # labels 7, 13, 15 intentionally missing -> '' -> zeros rows
    }
    labels = list(range(batch))

    # Deterministic parameter init (synthetic, matches nn.Embedding / nn.Linear shapes).
    key = jax.random.PRNGKey(0)
    k_emb, k_w, k_b = jax.random.split(key, 3)
    embedding_f32 = jax.random.normal(k_emb, (vocab_size, embedding_dim), jnp.float32)
    w_fc1 = jax.random.normal(k_w, (hidden_dim, embedding_dim), jnp.float32) * 0.1  # (H, E)
    b_fc1 = jax.random.normal(k_b, (hidden_dim,), jnp.float32) * 0.1

    # Kernel-side storage: bf16 table + transposed bf16 fc1 weight, f32 bias row.
    embedding_bf16 = embedding_f32.astype(jnp.bfloat16)           # (V, E)
    w_fc1_t_bf16 = jnp.asarray(w_fc1.T).astype(jnp.bfloat16)      # (E, H)
    b_fc1_row = b_fc1.reshape(1, hidden_dim)                      # (1, H)

    # Tokenize every label (pure Python, as in the PyTorch forward) and pad with -1.
    idx_rows = []
    for lbl in labels:
        idx = tokenize(lbl, label_map)
        assert len(idx) <= max_seq
        idx_rows.append(idx + [-1] * (max_seq - len(idx)))
    idx_padded = jnp.asarray(idx_rows, dtype=jnp.int32)           # (B, S)

    out = text_mlp_pallas(idx_padded, embedding_bf16, w_fc1_t_bf16, b_fc1_row)
    out = jax.block_until_ready(out)

    # Pure-JAX f32 reference of the per-label semantics, using the bf16-stored
    # module parameters (what the kernel actually reads).
    emb_ref_f32 = embedding_bf16.astype(jnp.float32)
    w_ref_f32 = w_fc1_t_bf16.astype(jnp.float32)                  # (E, H)
    refs = []
    for lbl in labels:
        idx = tokenize(lbl, label_map)
        if not idx:
            refs.append(jnp.zeros((1, hidden_dim), jnp.float32))
        else:
            x = jnp.mean(emb_ref_f32[jnp.asarray(idx, dtype=jnp.int32)], axis=0,
                         keepdims=True)
            y = jnp.dot(x, w_ref_f32, precision=lax.Precision.HIGHEST) + b_fc1_row
            refs.append(jnp.maximum(y, 0.0))
    ref = jnp.concatenate(refs, axis=0)

    assert out.shape == (batch, hidden_dim)
    # Kernel uses bf16 MXU operands with f32 accumulation (reference is f32), so
    # compare at a bf16-appropriate tolerance.
    assert jnp.allclose(out, ref, atol=1e-2, rtol=1e-2), "mismatch vs JAX reference"

    print("KERNEL_OK")
</pallas_src>

<mosaic_0001>
module attributes {stable_mosaic.version = 11 : i64} {
  func.func @textmlp_kernel(%arg0: i32, %arg1: memref<8x16xi32, #tpu.memory_space<vmem>>, %arg2: memref<128x128xbf16, #tpu.memory_space<vmem>>, %arg3: memref<128x128xbf16, #tpu.memory_space<vmem>>, %arg4: memref<1x128xf32, #tpu.memory_space<vmem>>, %arg5: memref<8x128xf32, #tpu.memory_space<vmem>>) attributes {dimension_semantics = [#tpu.dimension_semantics<parallel>], iteration_bounds = array<i64: 2>, scalar_prefetch = 0 : i64, scratch_operands = 0 : i64, tpu.core_type = #tpu.core_type<tc>, window_params = [{transform_indices = @transform_0, window_bounds = array<i64: 8, 16>}, {pipeline_mode = #tpu.pipeline_mode<synchronous>, transform_indices = @transform_1, window_bounds = array<i64: 128, 128>}, {pipeline_mode = #tpu.pipeline_mode<synchronous>, transform_indices = @transform_2, window_bounds = array<i64: 128, 128>}, {pipeline_mode = #tpu.pipeline_mode<synchronous>, transform_indices = @transform_3, window_bounds = array<i64: 1, 128>}, {transform_indices = @transform_4, window_bounds = array<i64: 8, 128>}]} {
    %c0 = arith.constant 0 : index
    %c0_0 = arith.constant 0 : index
    %0 = vector.load %arg1[%c0, %c0_0] : memref<8x16xi32, #tpu.memory_space<vmem>>, vector<8x16xi32>
    %1 = tpu.iota {dimensions = array<i32: 2>} : vector<8x16x128xi32>
    %2 = vector.shape_cast %0 : vector<8x16xi32> to vector<8x16x1xi32>
    %3 = vector.broadcast %2 : vector<8x16x1xi32> to vector<8x16x128xi32>
    %4 = arith.cmpi eq, %3, %1 : vector<8x16x128xi32>
    %5 = arith.extui %4 : vector<8x16x128xi1> to vector<8x16x128xi32>
    %cst = arith.constant dense<0> : vector<8x128xi32>
    %6 = vector.multi_reduction <add>, %5, %cst [1] : vector<8x16x128xi32> to vector<8x128xi32>
    %c0_i32 = arith.constant 0 : i32
    %7 = vector.broadcast %c0_i32 : i32 to vector<8x16xi32>
    %8 = arith.cmpi sge, %0, %7 : vector<8x16xi32>
    %9 = arith.extui %8 : vector<8x16xi1> to vector<8x16xi32>
    %cst_1 = arith.constant dense<0> : vector<8xi32>
    %10 = vector.multi_reduction <add>, %9, %cst_1 [1] : vector<8x16xi32> to vector<8xi32>
    %11 = vector.shape_cast %10 : vector<8xi32> to vector<8x1xi32>
    %12 = arith.sitofp %11 : vector<8x1xi32> to vector<8x1xf32>
    %c0_i32_2 = arith.constant 0 : i32
    %13 = vector.broadcast %c0_i32_2 : i32 to vector<8x1xi32>
    %14 = arith.cmpi sgt, %11, %13 : vector<8x1xi32>
    %cst_3 = arith.constant 1.000000e+00 : f32
    %15 = vector.broadcast %cst_3 : f32 to vector<8x1xf32>
    %16 = arith.maximumf %12, %15 : vector<8x1xf32>
    %cst_4 = arith.constant 1.000000e+00 : f32
    %17 = vector.broadcast %cst_4 : f32 to vector<8x1xf32>
    %18 = arith.divf %17, %16 : vector<8x1xf32>
    %cst_5 = arith.constant 0.000000e+00 : f32
    %19 = vector.broadcast %cst_5 : f32 to vector<8x1xf32>
    %20 = arith.select %14, %18, %19 : vector<8x1xi1>, vector<8x1xf32>
    %21 = arith.sitofp %6 : vector<8x128xi32> to vector<8x128xf32>
    %22 = arith.truncf %21 : vector<8x128xf32> to vector<8x128xbf16>
    %c0_6 = arith.constant 0 : index
    %c0_7 = arith.constant 0 : index
    %23 = vector.load %arg2[%c0_6, %c0_7] : memref<128x128xbf16, #tpu.memory_space<vmem>>, vector<128x128xbf16>
    %cst_8 = arith.constant dense<0.000000e+00> : vector<8x128xf32>
    %24 = tpu.matmul %22, %23, %cst_8 {dimension_numbers = #tpu.dot_dimension_numbers<[1], [0], [0], [1], [0, 0, 1, 1], [], []>} : vector<8x128xbf16>, vector<128x128xbf16>, vector<8x128xf32> -> vector<8x128xf32>
    %25 = vector.broadcast %20 : vector<8x1xf32> to vector<8x128xf32>
    %26 = arith.mulf %24, %25 : vector<8x128xf32>
    %27 = arith.truncf %26 : vector<8x128xf32> to vector<8x128xbf16>
    %c0_9 = arith.constant 0 : index
    %c0_10 = arith.constant 0 : index
    %28 = vector.load %arg3[%c0_9, %c0_10] : memref<128x128xbf16, #tpu.memory_space<vmem>>, vector<128x128xbf16>
    %cst_11 = arith.constant dense<0.000000e+00> : vector<8x128xf32>
    %29 = tpu.matmul %27, %28, %cst_11 {dimension_numbers = #tpu.dot_dimension_numbers<[1], [0], [0], [1], [0, 0, 1, 1], [], []>} : vector<8x128xbf16>, vector<128x128xbf16>, vector<8x128xf32> -> vector<8x128xf32>
    %c0_12 = arith.constant 0 : index
    %c0_13 = arith.constant 0 : index
    %30 = vector.load %arg4[%c0_12, %c0_13] : memref<1x128xf32, #tpu.memory_space<vmem>>, vector<1x128xf32>
    %31 = vector.broadcast %30 : vector<1x128xf32> to vector<8x128xf32>
    %32 = arith.addf %29, %31 : vector<8x128xf32>
    %cst_14 = arith.constant 0.000000e+00 : f32
    %33 = vector.broadcast %cst_14 : f32 to vector<8x128xf32>
    %34 = arith.maximumf %32, %33 : vector<8x128xf32>
    %c0_i32_15 = arith.constant 0 : i32
    %35 = vector.broadcast %c0_i32_15 : i32 to vector<8x1xi32>
    %36 = arith.cmpi sgt, %11, %35 : vector<8x1xi32>
    %37 = arith.extui %36 : vector<8x1xi1> to vector<8x1xi32>
    %38 = arith.sitofp %37 : vector<8x1xi32> to vector<8x1xf32>
    %39 = vector.broadcast %38 : vector<8x1xf32> to vector<8x128xf32>
    %40 = arith.mulf %34, %39 : vector<8x128xf32>
    %c0_16 = arith.constant 0 : index
    %c0_17 = arith.constant 0 : index
    %41 = vector.load %arg5[%c0_16, %c0_17] : memref<8x128xf32, #tpu.memory_space<vmem>>, vector<8x128xf32>
    tpu.vector_store %arg5[%c0_16, %c0_17], %40 {strides = array<i32>} : memref<8x128xf32, #tpu.memory_space<vmem>>, vector<8x128xf32>,
    return
  }
  func.func @transform_0(%arg0: i32) -> (i32, i32) {
    %c0_i32 = arith.constant 0 : i32
    %c0_i32_0 = arith.constant 0 : i32
    return %arg0, %c0_i32 : i32, i32
  }
  func.func @transform_1(%arg0: i32) -> (i32, i32) {
    %c0_i32 = arith.constant 0 : i32
    %c0_i32_0 = arith.constant 0 : i32
    %c0_i32_1 = arith.constant 0 : i32
    return %c0_i32, %c0_i32_0 : i32, i32
  }
  func.func @transform_2(%arg0: i32) -> (i32, i32) {
    %c0_i32 = arith.constant 0 : i32
    %c0_i32_0 = arith.constant 0 : i32
    %c0_i32_1 = arith.constant 0 : i32
    return %c0_i32, %c0_i32_0 : i32, i32
  }
  func.func @transform_3(%arg0: i32) -> (i32, i32) {
    %c0_i32 = arith.constant 0 : i32
    %c0_i32_0 = arith.constant 0 : i32
    %c0_i32_1 = arith.constant 0 : i32
    return %c0_i32, %c0_i32_0 : i32, i32
  }
  func.func @transform_4(%arg0: i32) -> (i32, i32) {
    %c0_i32 = arith.constant 0 : i32
    %c0_i32_0 = arith.constant 0 : i32
    return %arg0, %c0_i32 : i32, i32
  }
}

</mosaic_0001>

<llo_original>
// kernel: tpu_custom_call.1
$region0: #{tpu_custom_call.1}
  #allocation0 [shape = 'u32[]', space=smem, size = 0x4, offset = 0x4, fixed_abs, tag = 'smem constant byte address 0x4 - core index']
  #allocation1 [shape = 'u32[144,128]{1,0:T(1,128)}', space=vmem, size = 0x12000, scoped, tag = 'internal scratch']
  %s0 = inlined_call_operand.hbm [shape: s32[16,16], index: 0, kind: input, shape index: {}]
  %s1 = inlined_call_operand.hbm [shape: bf16[128,128], index: 1, kind: input, shape index: {}]
  %s2 = inlined_call_operand.hbm [shape: bf16[128,128], index: 2, kind: input, shape index: {}]
  %s3 = inlined_call_operand.vmem [shape: f32[1,128], index: 3, kind: input, shape index: {}]
  %s4 = inlined_call_operand.hbm [shape: f32[16,128], index: 4, kind: output, shape index: {}]
  %s5 = sld [smem:[#allocation0]]
  $region61: #{tpu_custom_call.1} parent=0
    _
  %s7 = ssub.s32 1, %s5
  %s8 = scalar_select 0, %s7, %s5
  $region1: #{tpu_custom_call.1} parent=0
    #allocation2 [shape = 'u8[8192]{0}', space=vmem, size = 0x2000, scoped, tag = 'input window, operand 0']
    #allocation3 [shape = 's32[2]{0}', space=sflag, size = 0x8, scoped, tag = 'scoped memory for tpu_custom_call.1']
    #allocation4 [shape = 's32[2]{0}', space=sflag, size = 0x8, scoped, tag = 'scoped memory for tpu_custom_call.1']
    #allocation5 [shape = 'u8[32768]{0}', space=vmem, size = 0x8000, scoped, tag = 'input window, operand 1, single buffered']
    #allocation6 [shape = 's32[1]{0}', space=sflag, size = 0x4, scoped, tag = 'scoped memory for tpu_custom_call.1']
    #allocation7 [shape = 'u8[32768]{0}', space=vmem, size = 0x8000, scoped, tag = 'input window, operand 2, single buffered']
    #allocation8 [shape = 'u8[8192]{0}', space=vmem, size = 0x2000, scoped, tag = 'output window, operand 0']
    %9 = vsyncpa [#allocation3], 0
    %s10 = scalar_lea.sflag [#allocation3], 1
    %11 = vsyncpa %s10, 0
    %12 = vsyncpa [#allocation6], 0
    %13 = vsyncpa [#allocation4], 0
    %s14 = scalar_lea.sflag [#allocation4], 1
    %15 = vsyncpa %s14, 0
    loop: start=0, step=1, limit=4
    $region2: #{tpu_custom_call.1} parent=1 // loop_pre_header
      _
    $region3: #{tpu_custom_call.1} parent=1 // loop_header
      %s17 = sphi 0, %s21
      %p18 = scmp.ge.s32.totalorder %s17, 4
      %s27 = sphi 0, %s29
      %s30 = sphi 0, %s27
      %s31 = sphi 0, %s30
      %s47 = sphi 0, %s31
      %s51 = sphi 0, %s51
      %s53 = sphi 0, %s51
      %s54 = sphi 0, %s53
      %s68 = sphi 0, %s54
      %s72 = sphi 0, %s72
      %s74 = sphi 0, %s72
      %s75 = sphi 0, %s74
      %s89 = sphi 0, %s75
      %s93 = sphi 0, %s93
      %s95 = sphi 0, %s93
      %s96 = sphi 0, %s95
      %s110 = sphi 0, %s96
      %s116 = sphi 0, %s118
      %s119 = sphi 0, %s116
      %s120 = sphi 0, %s119
      %s136 = sphi 0, %s120
    $region4: #{tpu_custom_call.1} parent=1 // loop_header_branch
      %20 = sbr.rel (%p18) target = $region8
    $region5: #{tpu_custom_call.1} parent=1 // loop_body
      %s22 = ssub.s32 %s17, 1
      %s23 = ssub.s32 %s17, 2
      %s24 = sadd.s32 %s17, 1
      %s25 = ssub.s32 %s17, %s24
      %p26 = scmp.eq.s32.totalorder %s25, 0
      %s28 = sadd.s32 %s27, 1
      %s29 = scalar_select %p26, %s27, %s28
      %p32 = pneg %p26
      %p33 = scmp.eq.s32.totalorder %s17, 1
      %p34 = por %p32, %p33
      %p35 = scmp.ne.s32.totalorder %s27, %s30
      %p36 = scmp.eq.s32.totalorder %s17, 0
      %p37 = por %p35, %p36
      %p38 = scmp.ne.s32.totalorder %s27, %s30
      %p39 = scmp.eq.s32.totalorder %s22, 1
      %p40 = por %p38, %p39
      %p41 = scmp.ne.s32.totalorder %s30, %s31
      %p42 = scmp.eq.s32.totalorder %s22, 0
      %p43 = por %p41, %p42
      %p44 = scmp.ne.s32.totalorder %s30, %s31
      %p45 = scmp.eq.s32.totalorder %s23, 1
      %p46 = por %p44, %p45
      %p48 = scmp.ne.s32.totalorder %s31, %s47
      %p49 = scmp.eq.s32.totalorder %s23, 0
      %p50 = por %p48, %p49
      %s52 = sadd.s32 %s51, 1
      %p55 = scmp.eq.s32.totalorder %s17, 1
      %p56 = scmp.ne.s32.totalorder %s51, %s53
      %p57 = scmp.eq.s32.totalorder %s17, 0
      %p58 = por %p56, %p57
      %p59 = scmp.ne.s32.totalorder %s51, %s53
      %p60 = scmp.eq.s32.totalorder %s22, 1
      %p61 = por %p59, %p60
      %p62 = scmp.ne.s32.totalorder %s53, %s54
      %p63 = scmp.eq.s32.totalorder %s22, 0
      %p64 = por %p62, %p63
      %p65 = scmp.ne.s32.totalorder %s53, %s54
      %p66 = scmp.eq.s32.totalorder %s23, 1
      %p67 = por %p65, %p66
      %p69 = scmp.ne.s32.totalorder %s54, %s68
      %p70 = scmp.eq.s32.totalorder %s23, 0
      %p71 = por %p69, %p70
      %s73 = sadd.s32 %s72, 1
      %p76 = scmp.eq.s32.totalorder %s17, 1
      %p77 = scmp.ne.s32.totalorder %s72, %s74
      %p78 = scmp.eq.s32.totalorder %s17, 0
      %p79 = por %p77, %p78
      %p80 = scmp.ne.s32.totalorder %s72, %s74
      %p81 = scmp.eq.s32.totalorder %s22, 1
      %p82 = por %p80, %p81
      %p83 = scmp.ne.s32.totalorder %s74, %s75
      %p84 = scmp.eq.s32.totalorder %s22, 0
      %p85 = por %p83, %p84
      %p86 = scmp.ne.s32.totalorder %s74, %s75
      %p87 = scmp.eq.s32.totalorder %s23, 1
      %p88 = por %p86, %p87
      %p90 = scmp.ne.s32.totalorder %s75, %s89
      %p91 = scmp.eq.s32.totalorder %s23, 0
      %p92 = por %p90, %p91
      %s94 = sadd.s32 %s93, 1
      %p97 = scmp.eq.s32.totalorder %s17, 1
      %p98 = scmp.ne.s32.totalorder %s93, %s95
      %p99 = scmp.eq.s32.totalorder %s17, 0
      %p100 = por %p98, %p99
      %p101 = scmp.ne.s32.totalorder %s93, %s95
      %p102 = scmp.eq.s32.totalorder %s22, 1
      %p103 = por %p101, %p102
      %p104 = scmp.ne.s32.totalorder %s95, %s96
      %p105 = scmp.eq.s32.totalorder %s22, 0
      %p106 = por %p104, %p105
      %p107 = scmp.ne.s32.totalorder %s95, %s96
      %p108 = scmp.eq.s32.totalorder %s23, 1
      %p109 = por %p107, %p108
      %p111 = scmp.ne.s32.totalorder %s96, %s110
      %p112 = scmp.eq.s32.totalorder %s23, 0
      %p113 = por %p111, %p112
      %s114 = ssub.s32 %s17, %s24
      %p115 = scmp.eq.s32.totalorder %s114, 0
      %s117 = sadd.s32 %s116, 1
      %s118 = scalar_select %p115, %s116, %s117
      %p121 = pneg %p115
      %p122 = scmp.eq.s32.totalorder %s17, 1
      %p123 = por %p121, %p122
      %p124 = scmp.ne.s32.totalorder %s116, %s119
      %p125 = scmp.eq.s32.totalorder %s17, 0
      %p126 = por %p124, %p125
      %p127 = scmp.ne.s32.totalorder %s116, %s119
      %p128 = scmp.eq.s32.totalorder %s22, 1
      %p129 = por %p127, %p128
      %p130 = scmp.ne.s32.totalorder %s119, %s120
      %p131 = scmp.eq.s32.totalorder %s22, 0
      %p132 = por %p130, %p131
      %p133 = scmp.ne.s32.totalorder %s119, %s120
      %p134 = scmp.eq.s32.totalorder %s23, 1
      %p135 = por %p133, %p134
      %p137 = scmp.ne.s32.totalorder %s120, %s136
      %p138 = scmp.eq.s32.totalorder %s23, 0
      %p139 = por %p137, %p138
      %p140 = scmp.le.s32.totalorder 1, %s17
      %p141 = scmp.lt.s32.totalorder %s17, 3
      %p142 = pnand %p140, %p141
      %p143 = pneg %p142
      // Predicated region
      $region9: #{tpu_custom_call.1} parent=5 // pred_check
        _
      $region10: #{tpu_custom_call.1} parent=5 // pred_check_branch
        %145 = sbr.rel (%p142) target = $region12
      $region11: #{tpu_custom_call.1} parent=5 // pred_region
        %s146 = ssub.s32 %s17, 1
        // Predicated region
        $region13: #{tpu_custom_call.1} parent=11 // pred_check
          %p147 = pneg %p64
        $region14: #{tpu_custom_call.1} parent=11 // pred_check_branch
          %149 = sbr.rel (%p147) target = $region16
        $region15: #{tpu_custom_call.1} parent=11 // pred_region
          %s151 = ssub.s32 1024, 1024
          %152 = vsyncadd [#allocation6], %s151
          %s153 = sshll.u32 [#allocation5], 4
          %s154 = int_to_ptr.vmem [resolvable:$true] %s153
          %159 = dma.hbm_to_vmem [thread:$0]  %s1, 1024, %s154, [#allocation6], 64, 64, 4
        $region16: #{tpu_custom_call.1} parent=11 // pred_fallthru
          _
        // Predicated region
        $region17: #{tpu_custom_call.1} parent=11 // pred_check
          %p160 = pneg %p85
        $region18: #{tpu_custom_call.1} parent=11 // pred_check_branch
          %162 = sbr.rel (%p160) target = $region20
        $region19: #{tpu_custom_call.1} parent=11 // pred_region
          %s164 = ssub.s32 1024, 1024
          %165 = vsyncadd [#allocation6], %s164
          %s166 = sshll.u32 [#allocation7], 4
          %s167 = int_to_ptr.vmem [resolvable:$true] %s166
          %172 = dma.hbm_to_vmem [thread:$0]  %s2, 1024, %s167, [#allocation6], 64, 64, 4
        $region20: #{tpu_custom_call.1} parent=11 // pred_fallthru
          _
        // Predicated region
        $region21: #{tpu_custom_call.1} parent=11 // pred_check
          %p173 = pneg %p106
        $region22: #{tpu_custom_call.1} parent=11 // pred_check_branch
          %175 = sbr.rel (%p173) target = $region24
        $region23: #{tpu_custom_call.1} parent=11 // pred_region
          _
        $region24: #{tpu_custom_call.1} parent=11 // pred_fallthru
          _
      $region12: #{tpu_custom_call.1} parent=5 // pred_fallthru
        _
      %p176 = scmp.lt.s32.totalorder %s17, 2
      // Predicated region
      $region25: #{tpu_custom_call.1} parent=5 // pred_check
        %p177 = pneg %p176
      $region26: #{tpu_custom_call.1} parent=5 // pred_check_branch
        %179 = sbr.rel (%p177) target = $region28
      $region27: #{tpu_custom_call.1} parent=5 // pred_region
        // Predicated region
        $region29: #{tpu_custom_call.1} parent=27 // pred_check
          %p180 = pneg %p37
        $region30: #{tpu_custom_call.1} parent=27 // pred_check_branch
          %182 = sbr.rel (%p180) target = $region32
        $region31: #{tpu_custom_call.1} parent=27 // pred_region
          %s183 = sand.u32 %s27, 1
          %s184 = scalar_lea.sflag [#allocation3], %s183
          %s185 = sand.u32 %s27, 1
          %s186 = smul.addr %s185, 8
          %s187 = scalar_lea.vmem [#allocation2], %s186
          %s189 = ssub.s32 128, 128
          %190 = vsyncadd %s184, %s189
          %s191 = smul.addr %s17, 128
          %s192 = scalar_lea.hbm %s0, %s191
          %s194 = sshll.u32 %s187, 4
          %s195 = int_to_ptr.vmem [resolvable:$true] %s194
          %197 = dma.hbm_to_vmem [thread:$0]  %s192, 128, %s195, %s184
        $region32: #{tpu_custom_call.1} parent=27 // pred_fallthru
          _
      $region28: #{tpu_custom_call.1} parent=5 // pred_fallthru
        _
      %p198 = scmp.le.s32.totalorder 1, %s17
      %p199 = scmp.lt.s32.totalorder %s17, 3
      %p200 = pnand %p198, %p199
      %p201 = pneg %p200
      // Predicated region
      $region33: #{tpu_custom_call.1} parent=5 // pred_check
        _
      $region34: #{tpu_custom_call.1} parent=5 // pred_check_branch
        %203 = sbr.rel (%p200) target = $region36
      $region35: #{tpu_custom_call.1} parent=5 // pred_region
        %s204 = ssub.s32 %s17, 1
        %s205 = sand.u32 %s30, 1
        %s206 = scalar_lea.sflag [#allocation3], %s205
        %s207 = sand.u32 %s30, 1
        %s208 = smul.addr %s207, 8
        %s209 = scalar_lea.vmem [#allocation2], %s208
        // Predicated region
        $region37: #{tpu_custom_call.1} parent=35 // pred_check
          %p210 = pneg %p43
        $region38: #{tpu_custom_call.1} parent=35 // pred_check_branch
          %212 = sbr.rel (%p210) target = $region40
        $region39: #{tpu_custom_call.1} parent=35 // pred_region
          %213 = dma.done %s206, 128
        $region40: #{tpu_custom_call.1} parent=35 // pred_fallthru
          _
        // Predicated region
        $region41: #{tpu_custom_call.1} parent=35 // pred_check
          %p214 = pneg %p64
        $region42: #{tpu_custom_call.1} parent=35 // pred_check_branch
          %216 = sbr.rel (%p214) target = $region44
        $region43: #{tpu_custom_call.1} parent=35 // pred_region
          %217 = dma.done [#allocation6], 1024
        $region44: #{tpu_custom_call.1} parent=35 // pred_fallthru
          _
        // Predicated region
        $region45: #{tpu_custom_call.1} parent=35 // pred_check
          %p218 = pneg %p85
        $region46: #{tpu_custom_call.1} parent=35 // pred_check_branch
          %220 = sbr.rel (%p218) target = $region48
        $region47: #{tpu_custom_call.1} parent=35 // pred_region
          %221 = dma.done [#allocation6], 1024
        $region48: #{tpu_custom_call.1} parent=35 // pred_fallthru
          _
        %s222 = sand.u32 %s30, 1
        %s223 = scalar_lea.sflag [#allocation3], %s222
        %s224 = sand.u32 %s30, 1
        %s225 = smul.addr %s224, 8
        %s226 = scalar_lea.vmem [#allocation2], %s225
        %p227 = pneg %p43
        %p228 = pneg %p40
        %p229 = pneg %p64
        %p230 = pneg %p61
        %p231 = pneg %p85
        %p232 = pneg %p82
        %p233 = pneg %p106
        %p234 = pneg %p103
        %p235 = pneg %p132
        %p236 = pneg %p129
        %s237 = sand.u32 %s119, 1
        %s238 = scalar_lea.sflag [#allocation4], %s237
        %s239 = sand.u32 %s119, 1
        %s240 = smul.addr %s239, 8
        %s241 = scalar_lea.vmem [#allocation8], %s240
        %v243 = vld [vmem:[%s209] sm:$0xff]
        %v244 = vlaneseq
        %v245 = vand.u32 %v244, 127
        %v246 = vlaneseq
        %v247 = vshrl.u32 %v246, 7
        %v248 = vsub.s32 0, %v247
        %v249 = vrot.slane %v243, %v248
        %251 = vbcast.lane.b32.xlu0 %v249, 256
        %v252 = vpop.permute.xlu0 %251
        %s254 = sor.u32 256, 8
        %255 = vbcast.lane.b32.xlu0 %v249, %s254
        %v256 = vpop.permute.xlu0 %255
        %v257 = vlaneseq
        %v258 = vshrl.u32 %v257, 7
        %v259 = vsub.s32 1, %v258
        %v260 = vrot.slane %v243, %v259
        %262 = vbcast.lane.b32.xlu0 %v260, 256
        %v263 = vpop.permute.xlu0 %262
        %s265 = sor.u32 256, 8
        %266 = vbcast.lane.b32.xlu0 %v260, %s265
        %v267 = vpop.permute.xlu0 %266
        %v268 = vlaneseq
        %v269 = vshrl.u32 %v268, 7
        %v270 = vsub.s32 2, %v269
        %v271 = vrot.slane %v243, %v270
        %273 = vbcast.lane.b32.xlu0 %v271, 256
        %v274 = vpop.permute.xlu0 %273
        %s276 = sor.u32 256, 8
        %277 = vbcast.lane.b32.xlu0 %v271, %s276
        %v278 = vpop.permute.xlu0 %277
        %v279 = vlaneseq
        %v280 = vshrl.u32 %v279, 7
        %v281 = vsub.s32 3, %v280
        %v282 = vrot.slane %v243, %v281
        %284 = vbcast.lane.b32.xlu0 %v282, 256
        %v285 = vpop.permute.xlu0 %284
        %s287 = sor.u32 256, 8
        %288 = vbcast.lane.b32.xlu0 %v282, %s287
        %v289 = vpop.permute.xlu0 %288
        %v290 = vlaneseq
        %v291 = vshrl.u32 %v290, 7
        %v292 = vsub.s32 4, %v291
        %v293 = vrot.slane %v243, %v292
        %295 = vbcast.lane.b32.xlu0 %v293, 256
        %v296 = vpop.permute.xlu0 %295
        %s298 = sor.u32 256, 8
        %299 = vbcast.lane.b32.xlu0 %v293, %s298
        %v300 = vpop.permute.xlu0 %299
        %v301 = vlaneseq
        %v302 = vshrl.u32 %v301, 7
        %v303 = vsub.s32 5, %v302
        %v304 = vrot.slane %v243, %v303
        %306 = vbcast.lane.b32.xlu0 %v304, 256
        %v307 = vpop.permute.xlu0 %306
        %s309 = sor.u32 256, 8
        %310 = vbcast.lane.b32.xlu0 %v304, %s309
        %v311 = vpop.permute.xlu0 %310
        %v312 = vlaneseq
        %v313 = vshrl.u32 %v312, 7
        %v314 = vsub.s32 6, %v313
        %v315 = vrot.slane %v243, %v314
        %317 = vbcast.lane.b32.xlu0 %v315, 256
        %v318 = vpop.permute.xlu0 %317
        %s320 = sor.u32 256, 8
        %321 = vbcast.lane.b32.xlu0 %v315, %s320
        %v322 = vpop.permute.xlu0 %321
        %v323 = vlaneseq
        %v324 = vshrl.u32 %v323, 7
        %v325 = vsub.s32 7, %v324
        %v326 = vrot.slane %v243, %v325
        %328 = vbcast.lane.b32.xlu0 %v326, 256
        %v329 = vpop.permute.xlu0 %328
        %s331 = sor.u32 256, 8
        %332 = vbcast.lane.b32.xlu0 %v326, %s331
        %v333 = vpop.permute.xlu0 %332
        %vm334 = vcmp.eq.s32.totalorder %v252, %v245
        %vm335 = vcmp.eq.s32.totalorder %v256, %v245
        %vm336 = vcmp.eq.s32.totalorder %v263, %v245
        %vm337 = vcmp.eq.s32.totalorder %v267, %v245
        %vm338 = vcmp.eq.s32.totalorder %v274, %v245
        %vm339 = vcmp.eq.s32.totalorder %v278, %v245
        %vm340 = vcmp.eq.s32.totalorder %v285, %v245
        %vm341 = vcmp.eq.s32.totalorder %v289, %v245
        %vm342 = vcmp.eq.s32.totalorder %v296, %v245
        %vm343 = vcmp.eq.s32.totalorder %v300, %v245
        %vm344 = vcmp.eq.s32.totalorder %v307, %v245
        %vm345 = vcmp.eq.s32.totalorder %v311, %v245
        %vm346 = vcmp.eq.s32.totalorder %v318, %v245
        %vm347 = vcmp.eq.s32.totalorder %v322, %v245
        %vm348 = vcmp.eq.s32.totalorder %v329, %v245
        %vm349 = vcmp.eq.s32.totalorder %v333, %v245
        %v350 = vsel %vm334, 1, 0
        %v351 = vsel %vm335, 1, 0
        %v352 = vsel %vm336, 1, 0
        %v353 = vsel %vm337, 1, 0
        %v354 = vsel %vm338, 1, 0
        %v355 = vsel %vm339, 1, 0
        %v356 = vsel %vm340, 1, 0
        %v357 = vsel %vm341, 1, 0
        %v358 = vsel %vm342, 1, 0
        %v359 = vsel %vm343, 1, 0
        %v360 = vsel %vm344, 1, 0
        %v361 = vsel %vm345, 1, 0
        %v362 = vsel %vm346, 1, 0
        %v363 = vsel %vm347, 1, 0
        %v364 = vsel %vm348, 1, 0
        %v365 = vsel %vm349, 1, 0
        %v366 = vadd.s32 %v350, %v351
        %v367 = vrot.slane %v366, 4
        %v368 = vadd.s32 %v366, %v367
        %v369 = vrot.slane %v368, 2
        %v370 = vadd.s32 %v368, %v369
        %v371 = vrot.slane %v370, 1
        %v372 = vadd.s32 %v370, %v371
        %v373 = vadd.s32 %v352, %v353
        %v374 = vrot.slane %v373, 4
        %v375 = vadd.s32 %v373, %v374
        %v376 = vrot.slane %v375, 2
        %v377 = vadd.s32 %v375, %v376
        %v378 = vrot.slane %v377, 1
        %v379 = vadd.s32 %v377, %v378
        %v380 = vadd.s32 %v354, %v355
        %v381 = vrot.slane %v380, 4
        %v382 = vadd.s32 %v380, %v381
        %v383 = vrot.slane %v382, 2
        %v384 = vadd.s32 %v382, %v383
        %v385 = vrot.slane %v384, 1
        %v386 = vadd.s32 %v384, %v385
        %v387 = vadd.s32 %v356, %v357
        %v388 = vrot.slane %v387, 4
        %v389 = vadd.s32 %v387, %v388
        %v390 = vrot.slane %v389, 2
        %v391 = vadd.s32 %v389, %v390
        %v392 = vrot.slane %v391, 1
        %v393 = vadd.s32 %v391, %v392
        %v394 = vadd.s32 %v358, %v359
        %v395 = vrot.slane %v394, 4
        %v396 = vadd.s32 %v394, %v395
        %v397 = vrot.slane %v396, 2
        %v398 = vadd.s32 %v396, %v397
        %v399 = vrot.slane %v398, 1
        %v400 = vadd.s32 %v398, %v399
        %v401 = vadd.s32 %v360, %v361
        %v402 = vrot.slane %v401, 4
        %v403 = vadd.s32 %v401, %v402
        %v404 = vrot.slane %v403, 2
        %v405 = vadd.s32 %v403, %v404
        %v406 = vrot.slane %v405, 1
        %v407 = vadd.s32 %v405, %v406
        %v408 = vadd.s32 %v362, %v363
        %v409 = vrot.slane %v408, 4
        %v410 = vadd.s32 %v408, %v409
        %v411 = vrot.slane %v410, 2
        %v412 = vadd.s32 %v410, %v411
        %v413 = vrot.slane %v412, 1
        %v414 = vadd.s32 %v412, %v413
        %v415 = vadd.s32 %v364, %v365
        %v416 = vrot.slane %v415, 4
        %v417 = vadd.s32 %v415, %v416
        %v418 = vrot.slane %v417, 2
        %v419 = vadd.s32 %v417, %v418
        %v420 = vrot.slane %v419, 1
        %v421 = vadd.s32 %v419, %v420
        %vm422 = vcmp.ge.s32.totalorder %v243, 0
        %v423 = vsel %vm422, 1, 0
        %vm424 = vcmask 130048
        %v425 = vsel %vm424, %v423, 0
        %v426 = vand.u32 %v425, 65535
        %v427 = vshrl.u32 %v425, 16
        %v428 = vcvt.s32.f32 %v426
        %v429 = vcvt.s32.f32 %v427
        %430 = vadd.xlane.f32.xlu0 %v428
        %v431 = vpop.xlane.xlu0 %430
        %432 = vadd.xlane.f32.xlu0 %v429
        %v433 = vpop.xlane.xlu0 %432
        %v434 = vcvt.f32.s32 %v431
        %v435 = vcvt.f32.s32 %v433
        %v436 = vshll.u32 %v435, 16
        %v437 = vadd.s32 %v436, %v434
        %v438 = vcvt.s32.f32 %v437
        %vm439 = vcmp.gt.s32.totalorder %v437, 0
        %v440 = vmax.f32 %v438, 1.0
        %v441 = vrcp.pop %v440
        %v442 = vmul.f32 1.0, %v441
        %v443 = vsel %vm439, %v442, 0.0
        %v444 = vcvt.s32.f32 %v372
        %v445 = vcvt.s32.f32 %v379
        %v446 = vcvt.s32.f32 %v386
        %v447 = vcvt.s32.f32 %v393
        %v448 = vcvt.s32.f32 %v400
        %v449 = vcvt.s32.f32 %v407
        %v450 = vcvt.s32.f32 %v414
        %v451 = vcvt.s32.f32 %v421
        %v452 = vpack.c.bf16 %v444, %v444
        %v453 = vpack.c.bf16 %v445, %v445
        %v454 = vpack.c.bf16 %v446, %v446
        %v455 = vpack.c.bf16 %v447, %v447
        %v456 = vpack.c.bf16 %v448, %v448
        %v457 = vpack.c.bf16 %v449, %v449
        %v458 = vpack.c.bf16 %v450, %v450
        %v459 = vpack.c.bf16 %v451, %v451
        %v460 = vld [vmem:[#allocation5] sm:$0xf]
        %v461 = vld [vmem:[#allocation5 + $0x4] sm:$0xf]
        %v462 = vld [vmem:[#allocation5 + $0x8] sm:$0xf]
        %v463 = vld [vmem:[#allocation5 + $0xc] sm:$0xf]
        %v464 = vld [vmem:[#allocation5 + $0x10] sm:$0xf]
        %v465 = vld [vmem:[#allocation5 + $0x14] sm:$0xf]
        %v466 = vld [vmem:[#allocation5 + $0x18] sm:$0xf]
        %v467 = vld [vmem:[#allocation5 + $0x1c] sm:$0xf]
        %v468 = vld [vmem:[#allocation5 + $0x20] sm:$0xf]
        %v469 = vld [vmem:[#allocation5 + $0x24] sm:$0xf]
        %v470 = vld [vmem:[#allocation5 + $0x28] sm:$0xf]
        %v471 = vld [vmem:[#allocation5 + $0x2c] sm:$0xf]
        %v472 = vld [vmem:[#allocation5 + $0x30] sm:$0xf]
        %v473 = vld [vmem:[#allocation5 + $0x34] sm:$0xf]
        %v474 = vld [vmem:[#allocation5 + $0x38] sm:$0xf]
        %v475 = vld [vmem:[#allocation5 + $0x3c] sm:$0xf]
        %v484 = vunpack.c.l.b16 %v452
        %v485 = vunpack.c.l.b16 %v453
        %v486 = vunpack.c.l.b16 %v454
        %v487 = vunpack.c.l.b16 %v455
        %v488 = vunpack.c.l.b16 %v456
        %v489 = vunpack.c.l.b16 %v457
        %v490 = vunpack.c.l.b16 %v458
        %v491 = vunpack.c.l.b16 %v459
        %vm492 = vcmask 1041409
        %v493 = vsel %vm492, %v485, %v484
        %vm494 = vcmask 1042434
        %v495 = vsel %vm494, %v486, %v493
        %vm496 = vcmask 1043459
        %v497 = vsel %vm496, %v487, %v495
        %vm498 = vcmask 1044484
        %v499 = vsel %vm498, %v488, %v497
        %vm500 = vcmask 1045509
        %v501 = vsel %vm500, %v489, %v499
        %vm502 = vcmask 1046534
        %v503 = vsel %vm502, %v490, %v501
        %vm504 = vcmask 1047559
        %v505 = vsel %vm504, %v491, %v503
        %v506 = vpack.c.b16 %v505, %v505
        %v524 = vunpack.c.l.b16 %v460
        %v525 = vunpack.c.l.b16 %v461
        %v526 = vunpack.c.l.b16 %v462
        %v527 = vunpack.c.l.b16 %v463
        %v528 = vunpack.c.l.b16 %v464
        %v529 = vunpack.c.l.b16 %v465
        %v530 = vunpack.c.l.b16 %v466
        %v531 = vunpack.c.l.b16 %v467
        %v532 = vunpack.c.l.b16 %v468
        %v533 = vunpack.c.l.b16 %v469
        %v534 = vunpack.c.l.b16 %v470
        %v535 = vunpack.c.l.b16 %v471
        %v536 = vunpack.c.l.b16 %v472
        %v537 = vunpack.c.l.b16 %v473
        %v538 = vunpack.c.l.b16 %v474
        %v539 = vunpack.c.l.b16 %v475
        %v540 = vpack.c.b16 %v525, %v524
        %v541 = vpack.c.b16 %v527, %v526
        %v542 = vpack.c.b16 %v529, %v528
        %v543 = vpack.c.b16 %v531, %v530
        %v544 = vpack.c.b16 %v533, %v532
        %v545 = vpack.c.b16 %v535, %v534
        %v546 = vpack.c.b16 %v537, %v536
        %v547 = vpack.c.b16 %v539, %v538
        %556 = vmatprep.subr.bf16.mxu0 0
        %557 = vmatpush1.bf16.msra.mxu0 %v547
        %558 = vmatprep.subr.bf16.mxu0 0
        %559 = vmatpush1.bf16.msra.mxu0 %v546
        %560 = vmatprep.subr.bf16.mxu0 0
        %561 = vmatpush1.bf16.msra.mxu0 %v545
        %562 = vmatprep.subr.bf16.mxu0 0
        %563 = vmatpush1.bf16.msra.mxu0 %v544
        %564 = vmatprep.subr.bf16.mxu0 0
        %565 = vmatpush1.bf16.msra.mxu0 %v543
        %566 = vmatprep.subr.bf16.mxu0 0
        %567 = vmatpush1.bf16.msra.mxu0 %v542
        %568 = vmatprep.subr.bf16.mxu0 0
        %569 = vmatpush1.bf16.msra.mxu0 %v541
        %570 = vmatprep.subr.bf16.mxu0 0
        %571 = vmatpush1.bf16.msra.mxu0 %v540
        %572 = vmatprep.subr.bf16.mxu0 0
        %573 = vmatpush2.bf16.msra.mxu0 0
        %574 = vmatprep.subr.bf16.mxu0 0
        %575 = vmatpush2.bf16.msra.mxu0 0
        %576 = vmatprep.subr.bf16.mxu0 0
        %577 = vmatpush2.bf16.msra.mxu0 0
        %578 = vmatprep.subr.bf16.mxu0 0
        %579 = vmatpush2.bf16.msra.mxu0 0
        %580 = vmatprep.subr.bf16.mxu0 0
        %581 = vmatpush2.bf16.msra.mxu0 0
        %582 = vmatprep.subr.bf16.mxu0 0
        %583 = vmatpush2.bf16.msra.mxu0 0
        %584 = vmatprep.subr.bf16.mxu0 0
        %585 = vmatpush2.bf16.msra.mxu0 0
        %586 = vmatprep.subr.bf16.mxu0 0
        %587 = vmatpush2.bf16.msra.mxu0 0
        %588 = vmatprep.mubr.bf16.mxu0 0
        %589 = vmatmul.mubr.bf16.gmra.mxu0 %v506
        %v590 = vpop.f32.mrf.mxu0
        %v591 = vadd.f32 0.0, %v590
        %v592 = vpop.f32.mrf.mxu0
        %v593 = vpop.f32.mrf.mxu0
        %v594 = vpop.f32.mrf.mxu0
        %595 = vdwg.mxu0
        %v596 = vmul.f32 %v591, %v443
        %v597 = vpack.c.bf16 %v596, %v596
        %v598 = vld [vmem:[#allocation7] sm:$0xf]
        %v599 = vld [vmem:[#allocation7 + $0x4] sm:$0xf]
        %v600 = vld [vmem:[#allocation7 + $0x8] sm:$0xf]
        %v601 = vld [vmem:[#allocation7 + $0xc] sm:$0xf]
        %v602 = vld [vmem:[#allocation7 + $0x10] sm:$0xf]
        %v603 = vld [vmem:[#allocation7 + $0x14] sm:$0xf]
        %v604 = vld [vmem:[#allocation7 + $0x18] sm:$0xf]
        %v605 = vld [vmem:[#allocation7 + $0x1c] sm:$0xf]
        %v606 = vld [vmem:[#allocation7 + $0x20] sm:$0xf]
        %v607 = vld [vmem:[#allocation7 + $0x24] sm:$0xf]
        %v608 = vld [vmem:[#allocation7 + $0x28] sm:$0xf]
        %v609 = vld [vmem:[#allocation7 + $0x2c] sm:$0xf]
        %v610 = vld [vmem:[#allocation7 + $0x30] sm:$0xf]
        %v611 = vld [vmem:[#allocation7 + $0x34] sm:$0xf]
        %v612 = vld [vmem:[#allocation7 + $0x38] sm:$0xf]
        %v613 = vld [vmem:[#allocation7 + $0x3c] sm:$0xf]
        %v614 = vld [vmem:[%s3] sm:$0x1]
        %v616 = vlaneseq
        %v617 = vshrl.u32 %v616, 7
        %v618 = vsub.s32 0, %v617
        %v619 = vrot.slane %v614, %v618
        %v637 = vunpack.c.l.b16 %v598
        %v638 = vunpack.c.l.b16 %v599
        %v639 = vunpack.c.l.b16 %v600
        %v640 = vunpack.c.l.b16 %v601
        %v641 = vunpack.c.l.b16 %v602
        %v642 = vunpack.c.l.b16 %v603
        %v643 = vunpack.c.l.b16 %v604
        %v644 = vunpack.c.l.b16 %v605
        %v645 = vunpack.c.l.b16 %v606
        %v646 = vunpack.c.l.b16 %v607
        %v647 = vunpack.c.l.b16 %v608
        %v648 = vunpack.c.l.b16 %v609
        %v649 = vunpack.c.l.b16 %v610
        %v650 = vunpack.c.l.b16 %v611
        %v651 = vunpack.c.l.b16 %v612
        %v652 = vunpack.c.l.b16 %v613
        %v653 = vpack.c.b16 %v638, %v637
        %v654 = vpack.c.b16 %v640, %v639
        %v655 = vpack.c.b16 %v642, %v641
        %v656 = vpack.c.b16 %v644, %v643
        %v657 = vpack.c.b16 %v646, %v645
        %v658 = vpack.c.b16 %v648, %v647
        %v659 = vpack.c.b16 %v650, %v649
        %v660 = vpack.c.b16 %v652, %v651
        %669 = vmatprep.subr.bf16.mxu0 0
        %670 = vmatpush1.bf16.msra.mxu0 %v660
        %671 = vmatprep.subr.bf16.mxu0 0
        %672 = vmatpush1.bf16.msra.mxu0 %v659
        %673 = vmatprep.subr.bf16.mxu0 0
        %674 = vmatpush1.bf16.msra.mxu0 %v658
        %675 = vmatprep.subr.bf16.mxu0 0
        %676 = vmatpush1.bf16.msra.mxu0 %v657
        %677 = vmatprep.subr.bf16.mxu0 0
        %678 = vmatpush1.bf16.msra.mxu0 %v656
        %679 = vmatprep.subr.bf16.mxu0 0
        %680 = vmatpush1.bf16.msra.mxu0 %v655
        %681 = vmatprep.subr.bf16.mxu0 0
        %682 = vmatpush1.bf16.msra.mxu0 %v654
        %683 = vmatprep.subr.bf16.mxu0 0
        %684 = vmatpush1.bf16.msra.mxu0 %v653
        %685 = vmatprep.subr.bf16.mxu0 0
        %686 = vmatpush2.bf16.msra.mxu0 0
        %687 = vmatprep.subr.bf16.mxu0 0
        %688 = vmatpush2.bf16.msra.mxu0 0
        %689 = vmatprep.subr.bf16.mxu0 0
        %690 = vmatpush2.bf16.msra.mxu0 0
        %691 = vmatprep.subr.bf16.mxu0 0
        %692 = vmatpush2.bf16.msra.mxu0 0
        %693 = vmatprep.subr.bf16.mxu0 0
        %694 = vmatpush2.bf16.msra.mxu0 0
        %695 = vmatprep.subr.bf16.mxu0 0
        %696 = vmatpush2.bf16.msra.mxu0 0
        %697 = vmatprep.subr.bf16.mxu0 0
        %698 = vmatpush2.bf16.msra.mxu0 0
        %699 = vmatprep.subr.bf16.mxu0 0
        %700 = vmatpush2.bf16.msra.mxu0 0
        %701 = vmatprep.mubr.bf16.mxu0 0
        %702 = vmatmul.mubr.bf16.gmra.mxu0 %v597
        %v703 = vpop.f32.mrf.mxu0
        %v704 = vadd.f32 %v619, %v703
        %v705 = vpop.f32.mrf.mxu0
        %v706 = vpop.f32.mrf.mxu0
        %v707 = vpop.f32.mrf.mxu0
        %708 = vdwg.mxu0
        %v709 = vmax.f32 %v704, 0.0
        %v710 = vsel %vm439, 1, 0
        %v711 = vcvt.s32.f32 %v710
        %v712 = vmul.f32 %v709, %v711
        %713 = vst [vmem:[%s241] sm:$0xff] %v712
        %s714 = sand.u32 %s119, 1
        %s715 = scalar_lea.sflag [#allocation4], %s714
        %s716 = sand.u32 %s119, 1
        %s717 = smul.addr %s716, 8
        %s718 = scalar_lea.vmem [#allocation8], %s717
        // Predicated region
        $region49: #{tpu_custom_call.1} parent=35 // pred_check
          %p719 = pneg %p129
        $region50: #{tpu_custom_call.1} parent=35 // pred_check_branch
          %721 = sbr.rel (%p719) target = $region52
        $region51: #{tpu_custom_call.1} parent=35 // pred_region
          %s723 = ssub.s32 128, 128
          %724 = vsyncadd %s715, %s723
          %s725 = smul.addr %s22, 128
          %s726 = scalar_lea.hbm %s4, %s725
          %s728 = sshll.u32 %s718, 4
          %s729 = int_to_ptr.vmem [resolvable:$true] %s728
          %731 = dma.vmem_to_hbm [thread:$0]  %s729, 128, %s726, %s715
        $region52: #{tpu_custom_call.1} parent=35 // pred_fallthru
          _
      $region36: #{tpu_custom_call.1} parent=5 // pred_fallthru
        _
      %p732 = scmp.le.s32.totalorder 2, %s17
      // Predicated region
      $region53: #{tpu_custom_call.1} parent=5 // pred_check
        %p733 = pneg %p732
      $region54: #{tpu_custom_call.1} parent=5 // pred_check_branch
        %735 = sbr.rel (%p733) target = $region56
      $region55: #{tpu_custom_call.1} parent=5 // pred_region
        %s736 = ssub.s32 %s17, 2
        // Predicated region
        $region57: #{tpu_custom_call.1} parent=55 // pred_check
          %p737 = pneg %p135
        $region58: #{tpu_custom_call.1} parent=55 // pred_check_branch
          %739 = sbr.rel (%p737) target = $region60
        $region59: #{tpu_custom_call.1} parent=55 // pred_region
          %s740 = sand.u32 %s120, 1
          %s741 = scalar_lea.sflag [#allocation4], %s740
          %s742 = sand.u32 %s120, 1
          %s743 = smul.addr %s742, 8
          %s744 = scalar_lea.vmem [#allocation8], %s743
          %745 = dma.done %s741, 128
        $region60: #{tpu_custom_call.1} parent=55 // pred_fallthru
          _
      $region56: #{tpu_custom_call.1} parent=5 // pred_fallthru
        _
    $region6: #{tpu_custom_call.1} parent=1 // loop_footer
      %s21 = sadd.s32 1, %s17
    $region7: #{tpu_custom_call.1} parent=1 // loop_footer_branch
      %16 = sbr.rel target = $region3
    $region8: #{tpu_custom_call.1} parent=1 // loop_exit
      _
    %746 = vsyncpa [#allocation3], 1
    %s747 = scalar_lea.sflag [#allocation3], 1
    %748 = vsyncpa %s747, 1
    %749 = vsyncpa [#allocation6], 1
    %750 = vsyncpa [#allocation4], 1
    %s751 = scalar_lea.sflag [#allocation4], 1
    %752 = vsyncpa %s751, 1

</llo_original>
